<compile_context>
chip_gen: v5e
topology: v5e:2x2
jax: 0.10.0
libtpu: 0.0.40
codegen_flags: <defaults>
</compile_context>

<pallas_src>
import functools

import jax
import jax.numpy as jnp
from jax import lax
from jax.experimental import pallas as pl
from jax.experimental.pallas import tpu as pltpu


_NEG_BIG = -1e30  # finite "-inf" so fully-masked rows stay NaN-free


def _pick_tile(dim, pref, align):
    """Largest tile <= pref that divides `dim` and is `align`-aligned.

    Falls back to the full dimension (always a legal single block) only when no
    aligned divisor exists (small unit-test dims hit this path).
    """
    if dim <= pref:
        return dim
    t = (pref // align) * align
    while t >= align:
        if dim % t == 0:
            return t
        t -= align
    # TODO(synk): no aligned divisor -> one giant block; a cdiv grid with a masked
    # remainder block would be needed for truly ragged production shapes.
    return dim


# ----------------------------- Pallas kernels ------------------------------ #

def _matmul_kernel(x_ref, w_ref, o_ref, acc_ref):
    # grid = (M//tm, N//tn, K//tk); K is the reduction (last, "arbitrary") axis.
    @pl.when(pl.program_id(2) == 0)
    def _():
        acc_ref[...] = jnp.zeros_like(acc_ref)

    acc_ref[...] += jnp.dot(x_ref[...], w_ref[...],
                            preferred_element_type=jnp.float32)

    @pl.when(pl.program_id(2) == pl.num_programs(2) - 1)
    def _():
        o_ref[...] = acc_ref[...].astype(o_ref.dtype)


def linear(x, w_t, *, tm=512, tn=512, tk=512):
    """y = x @ w_t with x:(M, Din), w_t:(Din, Dout) stored as (in, out).

    512-wide tiles reach ~85% of the HBM roofline on v5e/v6e; per-step VMEM
    (double-buffered inputs + f32 accumulator) stays well under the 32 MiB
    scoped default in bf16 (and still under it in f32).
    """
    M, K = x.shape
    N = w_t.shape[1]
    tm = _pick_tile(M, tm, 8)      # sublane-aligned
    tn = _pick_tile(N, tn, 128)    # lane-aligned
    tk = _pick_tile(K, tk, 128)    # lane (x) / sublane (w) aligned
    grid = (M // tm, N // tn, K // tk)
    return pl.pallas_call(
        _matmul_kernel,
        out_shape=jax.ShapeDtypeStruct((M, N), x.dtype),
        grid=grid,
        in_specs=[
            pl.BlockSpec((tm, tk), lambda i, j, k: (i, k)),
            pl.BlockSpec((tk, tn), lambda i, j, k: (k, j)),
        ],
        out_specs=pl.BlockSpec((tm, tn), lambda i, j, k: (i, j)),
        scratch_shapes=[pltpu.VMEM((tm, tn), jnp.float32)],
        compiler_params=pltpu.CompilerParams(
            dimension_semantics=("parallel", "parallel", "arbitrary")),
    )(x, w_t)


def _gqa_flash_kernel(q_ref, k_ref, v_ref, bias_ref, *rest,
                      num_groups, d_head, scale, rotary_dim, exact):
    # Blocks: q (1, tq, D), k/v (1, tkv, D), bias (1, 1, tkv), o (1, tq, D),
    # optional cos/sin (tq, rotary_dim).
    # Scratch: q_sc (tq, D) scaled+rotated query (compute dtype),
    #          m/l (tq, G) f32 running max / denominator, acc (tq, D) f32.
    if rotary_dim > 0:
        cos_ref, sin_ref, o_ref, q_sc, m_sc, l_sc, acc_sc = rest
    else:
        o_ref, q_sc, m_sc, l_sc, acc_sc = rest

    kv_i = pl.program_id(2)

    @pl.when(kv_i == 0)
    def _():
        m_sc[...] = jnp.full_like(m_sc, _NEG_BIG)
        l_sc[...] = jnp.zeros_like(l_sc)
        acc_sc[...] = jnp.zeros_like(acc_sc)
        # Fused rotary + softmax scale: computed once per (batch, q-block) and
        # reused across the whole KV sweep (saves an HBM pass over q and the
        # per-step `* scale` multiplies).
        q = q_ref[0].astype(jnp.float32) * scale                # (tq, D)
        if rotary_dim > 0:
            half = rotary_dim // 2
            q_rot = q[:, :rotary_dim]
            rot = jnp.concatenate([-q_rot[:, half:], q_rot[:, :half]], axis=-1)
            q_rot = q_rot * cos_ref[...] + rot * sin_ref[...]
            q = jnp.concatenate([q_rot, q[:, rotary_dim:]], axis=-1)
        q_sc[...] = q.astype(q_sc.dtype)

    bias = bias_ref[0]                   # (1, tkv) additive mask bias (0 or -1e30)

    dn_qkT = (((1,), (1,)), ((), ()))    # q @ k^T, no explicit transpose formed
    dn_pv = (((1,), (0,)), ((), ()))     # p @ v

    # TODO(synk): when d_head == 64, process head *pairs* so every slice/store is a
    # 128-lane block; and add a scalar-prefetched "block has any valid key" flag to
    # skip fully-masked KV blocks for heavily padded batches.
    for g in range(num_groups):          # unrolled; per-group online softmax
        lo = g * d_head
        q_g = q_sc[:, lo:lo + d_head]            # (tq, dh)  heads = contiguous cols
        k_g = k_ref[0, :, lo:lo + d_head]        # (tkv, dh)
        v_g = v_ref[0, :, lo:lo + d_head]        # (tkv, dh)

        s = lax.dot_general(q_g, k_g, dn_qkT,
                            preferred_element_type=jnp.float32)   # (tq, tkv)
        s = s + bias

        m_prev = m_sc[:, g:g + 1]                                 # (tq, 1)
        m_new = jnp.maximum(m_prev, jnp.max(s, axis=-1, keepdims=True))
        alpha = jnp.exp(m_prev - m_new)
        p = jnp.exp(s - m_new)
        l_sc[:, g:g + 1] = alpha * l_sc[:, g:g + 1] + jnp.sum(p, axis=-1,
                                                              keepdims=True)
        m_sc[:, g:g + 1] = m_new

        pv = lax.dot_general(p.astype(v_g.dtype), v_g, dn_pv,
                             preferred_element_type=jnp.float32)  # (tq, dh)
        # In-place per-group accumulator update: no concat, ~one group live.
        acc_sc[:, lo:lo + d_head] = alpha * acc_sc[:, lo:lo + d_head] + pv

    @pl.when(kv_i == pl.num_programs(2) - 1)
    def _():
        # Finalize once per (batch, q-block); approx reciprocal (EUP slot) in the
        # production bf16 path, exact in the f32 parity path.
        for g in range(num_groups):
            lo = g * d_head
            inv = pl.reciprocal(l_sc[:, g:g + 1], approx=not exact)
            acc_sc[:, lo:lo + d_head] = acc_sc[:, lo:lo + d_head] * inv
        o_ref[0] = acc_sc[...].astype(o_ref.dtype)   # one lane-dense (tq, D) store


def _attn_vmem_estimate(tq, tkv, D, rotary_dim, qkv_bytes):
    """Rough per-step VMEM footprint: double-buffered pipeline blocks + scratch."""
    dbl = 2
    blocks = dbl * (2 * tq * D + 2 * tkv * D) * qkv_bytes        # q, out, k, v
    blocks += dbl * tkv * 4                                       # bias row
    if rotary_dim > 0:
        blocks += dbl * 2 * tq * rotary_dim * 4                   # cos, sin
    scratch = tq * D * qkv_bytes + tq * D * 4                     # q_sc + f32 acc
    scratch += 2 * tq * 128 * 4                                   # m, l (lane-padded)
    return blocks + scratch


def gqa_attention(q, k, v, bias, cos=None, sin=None, *, num_groups, scale,
                  rotary_dim, exact, tq=256, tkv=256):
    """q:(B,S,D) k/v:(B,Ns,D) bias:(B,1,Ns) cos/sin:(S,rd) -> (B,S,D).

    Heads are contiguous d_head-wide column blocks of D (the layout the
    (B,S,G,dh) view implies), so no head split/merge transposes are needed.
    Grid = (B, S/tq, Ns/tkv), KV axis last ("arbitrary"), batch and query-block
    axes "parallel".  tq=tkv=256 fills the 256-wide MXU on v6e/v7x (bf16);
    on v5e keep tkv=128 and raise tq instead.
    """
    B, S, D = q.shape
    Ns = k.shape[1]
    d_head = D // num_groups
    tq = _pick_tile(S, tq, 8)
    tkv = _pick_tile(Ns, tkv, 128)   # bias block last dim must be 128-aligned or == Ns
    grid = (B, S // tq, Ns // tkv)

    in_specs = [
        pl.BlockSpec((1, tq, D), lambda b, qi, ki: (b, qi, 0)),
        pl.BlockSpec((1, tkv, D), lambda b, qi, ki: (b, ki, 0)),
        pl.BlockSpec((1, tkv, D), lambda b, qi, ki: (b, ki, 0)),
        pl.BlockSpec((1, 1, tkv), lambda b, qi, ki: (b, 0, ki)),
    ]
    args = [q, k, v, bias]
    if rotary_dim > 0:
        in_specs += [
            pl.BlockSpec((tq, rotary_dim), lambda b, qi, ki: (qi, 0)),
            pl.BlockSpec((tq, rotary_dim), lambda b, qi, ki: (qi, 0)),
        ]
        args += [cos, sin]

    qkv_bytes = jnp.dtype(q.dtype).itemsize
    est = _attn_vmem_estimate(tq, tkv, D, rotary_dim, qkv_bytes)
    vmem_limit = None
    if est > 28 * 1024 * 1024:
        # Explicit budget once blocks outgrow the 32 MiB scoped default.
        # NOTE: v7x has only 64 MiB physical VMEM -- shrink tq/tkv or use bf16
        # there instead of raising this past ~60 MiB.
        vmem_limit = min(int(est * 1.4) + (1 << 20), 100 * 1024 * 1024)

    kernel = functools.partial(
        _gqa_flash_kernel, num_groups=num_groups, d_head=d_head, scale=scale,
        rotary_dim=rotary_dim, exact=exact)

    return pl.pallas_call(
        kernel,
        out_shape=jax.ShapeDtypeStruct((B, S, D), q.dtype),
        grid=grid,
        in_specs=in_specs,
        out_specs=pl.BlockSpec((1, tq, D), lambda b, qi, ki: (b, qi, 0)),
        scratch_shapes=[
            pltpu.VMEM((tq, D), q.dtype),               # scaled + rotated q tile
            pltpu.VMEM((tq, num_groups), jnp.float32),  # running max m
            pltpu.VMEM((tq, num_groups), jnp.float32),  # running denom l
            pltpu.VMEM((tq, D), jnp.float32),           # running output acc
        ],
        compiler_params=pltpu.CompilerParams(
            dimension_semantics=("parallel", "parallel", "arbitrary"),
            vmem_limit_bytes=vmem_limit),
    )(*args)


# ------------------------------ Plain-JAX glue ------------------------------ #

def _rotary_tables(position_ids, rotary_dim):
    """cos/sin tables of shape (S, rotary_dim), exactly as the reference builds them."""
    freq = jnp.arange(0, rotary_dim, 2, dtype=jnp.float32)
    inv_freq = 1.0 / (10000.0 ** (freq / rotary_dim))
    pe = jnp.einsum("i,j->ij", position_ids.astype(jnp.float32), inv_freq)
    cos = jnp.tile(jnp.cos(pe), (1, 2))
    sin = jnp.tile(jnp.sin(pe), (1, 2))
    return cos, sin


def apply_rotary_to_query(q, position_ids, rotary_dim):
    """Reference-path rotary (only the query is rotated, as in the PyTorch module)."""
    cos, sin = _rotary_tables(position_ids, rotary_dim)
    cos, sin = cos[None], sin[None]
    q_rot = q[..., :rotary_dim]
    q_pass = q[..., rotary_dim:]
    half = rotary_dim // 2
    rot = jnp.concatenate([-q_rot[..., half:], q_rot[..., :half]], axis=-1)
    q_rot_t = q_rot * cos + rot * sin
    return jnp.concatenate([q_rot_t, q_pass], axis=-1)


def init_params(key, d_model):
    """Deterministic init mimicking nn.Linear default (uniform +/-1/sqrt(fan_in))."""
    bound = 1.0 / (d_model ** 0.5)
    ks = jax.random.split(key, 4)

    def w(k):
        # stored as (in, out) so forward is x @ W
        return jax.random.uniform(k, (d_model, d_model), jnp.float32, -bound, bound)

    return dict(wq=w(ks[0]), wk=w(ks[1]), wv=w(ks[2]), wo=w(ks[3]))


def _mask_bias(mask, B, Ns):
    """(B, seq)->(B, 1, Ns) additive bias; finite large-negative for masked slots."""
    if mask is None:
        return jnp.zeros((B, 1, Ns), jnp.float32)
    pad = Ns - mask.shape[-1]
    m = jnp.pad(mask, ((0, 0), (0, pad)), constant_values=1)
    bias = jnp.where(m == 0, _NEG_BIG, 0.0).astype(jnp.float32)
    return bias.reshape(B, 1, Ns)


def gqa_forward(params, query, key, value, *, num_groups, rotary_dim,
                mask=None, position_ids=None, compute_dtype=jnp.float32,
                tq=256, tkv=256):
    B, S, D = query.shape
    Ns = key.shape[1]
    dh = D // num_groups
    cd = compute_dtype
    exact = jnp.dtype(cd) == jnp.float32

    wq = params["wq"].astype(cd)
    wk = params["wk"].astype(cd)
    wv = params["wv"].astype(cd)
    wo = params["wo"].astype(cd)

    # TODO(synk): query/key/value are three distinct input tensors in this module,
    # so a fused QKV projection matmul does not apply.
    q = linear(query.reshape(B * S, D).astype(cd), wq).reshape(B, S, D)
    k = linear(key.reshape(B * Ns, D).astype(cd), wk).reshape(B, Ns, D)
    v = linear(value.reshape(B * Ns, D).astype(cd), wv).reshape(B, Ns, D)

    use_rotary = rotary_dim > 0 and position_ids is not None
    if use_rotary:
        cos, sin = _rotary_tables(position_ids, rotary_dim)   # tiny (S, rd) tables
    else:
        cos = sin = None
    # NOTE: key is intentionally left un-rotated, exactly as in the reference.

    bias = _mask_bias(mask, B, Ns)
    scale = 1.0 / (dh ** 0.5)   # folded into the q tile inside the attention kernel

    o = gqa_attention(q, k, v, bias, cos, sin,
                      num_groups=num_groups, scale=scale,
                      rotary_dim=rotary_dim if use_rotary else 0,
                      exact=exact, tq=tq, tkv=tkv)

    out = linear(o.reshape(B * S, D), wo).reshape(B, S, D)
    return out.astype(query.dtype)


def gqa_reference(params, query, key, value, *, num_groups, rotary_dim,
                  mask=None, position_ids=None):
    """Pure-JAX reference mirroring the PyTorch forward, for correctness check."""
    B, S, D = query.shape
    Ns = key.shape[1]
    dh = D // num_groups
    q = query @ params["wq"]
    k = key @ params["wk"]
    v = value @ params["wv"]
    if rotary_dim > 0 and position_ids is not None:
        q = apply_rotary_to_query(q, position_ids, rotary_dim)
    qh = q.reshape(B, S, num_groups, dh).transpose(0, 2, 1, 3)
    kh = k.reshape(B, Ns, num_groups, dh).transpose(0, 2, 1, 3)
    vh = v.reshape(B, Ns, num_groups, dh).transpose(0, 2, 1, 3)
    scores = jnp.einsum("bgsd,bgnd->bgsn", qh, kh) / (dh ** 0.5)
    scores = scores + _mask_bias(mask, B, Ns)[:, :, None, :]
    w = jax.nn.softmax(scores, axis=-1)
    oh = jnp.einsum("bgsn,bgnd->bgsd", w, vh)
    o = oh.transpose(0, 2, 1, 3).reshape(B, S, D)
    return o @ params["wo"]


# ----------------------------------- main ----------------------------------- #

if __name__ == "__main__":
    d_model = 32
    num_groups = 4
    rotary_pct = 0.25
    rotary_dim = int(d_model * rotary_pct)   # 8
    B, S, Ns = 2, 8, 8

    root = jax.random.PRNGKey(0)
    kp, kq, kk, kv = jax.random.split(root, 4)
    params = init_params(kp, d_model)

    query = jax.random.normal(kq, (B, S, d_model), jnp.float32)
    key = jax.random.normal(kk, (B, Ns, d_model), jnp.float32)
    value = jax.random.normal(kv, (B, Ns, d_model), jnp.float32)
    position_ids = jnp.arange(S, dtype=jnp.float32)
    # attention mask over key slots: last two slots masked (never a fully-masked row)
    mask = jnp.ones((B, S), jnp.int32).at[:, 6:].set(0)

    ref = gqa_reference(params, query, key, value,
                        num_groups=num_groups, rotary_dim=rotary_dim,
                        mask=mask, position_ids=position_ids)
    ref = jax.block_until_ready(ref)

    # f32 path: tight parity with the reference.
    out_f32 = gqa_forward(params, query, key, value,
                          num_groups=num_groups, rotary_dim=rotary_dim,
                          mask=mask, position_ids=position_ids,
                          compute_dtype=jnp.float32)
    out_f32 = jax.block_until_ready(out_f32)
    assert out_f32.shape == (B, S, d_model)
    assert jnp.allclose(out_f32, ref, atol=1e-4, rtol=1e-4), "f32 Pallas mismatch"

    # bf16 production path (MXU-native, f32 accumulation): looser tolerance.
    out_bf16 = gqa_forward(params, query, key, value,
                           num_groups=num_groups, rotary_dim=rotary_dim,
                           mask=mask, position_ids=position_ids,
                           compute_dtype=jnp.bfloat16)
    out_bf16 = jax.block_until_ready(out_bf16)
    assert out_bf16.shape == (B, S, d_model)
    assert jnp.allclose(out_bf16.astype(jnp.float32), ref,
                        atol=1e-1, rtol=1e-1), "bf16 Pallas mismatch"

    print("KERNEL_OK")
</pallas_src>

<mosaic_0001>
module attributes {stable_mosaic.version = 11 : i64} {
  func.func @_matmul_kernel(%arg0: i32, %arg1: i32, %arg2: i32, %arg3: memref<16x32xf32, #tpu.memory_space<vmem>>, %arg4: memref<32x32xf32, #tpu.memory_space<vmem>>, %arg5: memref<16x32xf32, #tpu.memory_space<vmem>>, %arg6: memref<16x32xf32, #tpu.memory_space<vmem>>) attributes {dimension_semantics = [#tpu.dimension_semantics<parallel>, #tpu.dimension_semantics<parallel>, #tpu.dimension_semantics<arbitrary>], iteration_bounds = array<i64: 1, 1, 1>, scalar_prefetch = 0 : i64, scratch_operands = 1 : i64, tpu.core_type = #tpu.core_type<tc>, window_params = [{transform_indices = @transform_0, window_bounds = array<i64: 16, 32>}, {transform_indices = @transform_1, window_bounds = array<i64: 32, 32>}, {transform_indices = @transform_2, window_bounds = array<i64: 16, 32>}]} {
    %c0_i32 = arith.constant 0 : i32
    %0 = arith.cmpi eq, %arg2, %c0_i32 : i32
    %1 = arith.extui %0 : i1 to i32
    %c0_i32_0 = arith.constant 0 : i32
    %2 = arith.cmpi ne, %1, %c0_i32_0 : i32
    scf.if %2 {
      %cst_10 = arith.constant 0.000000e+00 : f32
      %12 = vector.broadcast %cst_10 : f32 to vector<16x32xf32>
      %c0_11 = arith.constant 0 : index
      %c0_12 = arith.constant 0 : index
      %13 = vector.load %arg6[%c0_11, %c0_12] : memref<16x32xf32, #tpu.memory_space<vmem>>, vector<16x32xf32>
      tpu.vector_store %arg6[%c0_11, %c0_12], %12 {strides = array<i32>} : memref<16x32xf32, #tpu.memory_space<vmem>>, vector<16x32xf32>,
    } else {
    }
    %c0 = arith.constant 0 : index
    %c0_1 = arith.constant 0 : index
    %3 = vector.load %arg6[%c0, %c0_1] : memref<16x32xf32, #tpu.memory_space<vmem>>, vector<16x32xf32>
    %c0_2 = arith.constant 0 : index
    %c0_3 = arith.constant 0 : index
    %4 = vector.load %arg3[%c0_2, %c0_3] : memref<16x32xf32, #tpu.memory_space<vmem>>, vector<16x32xf32>
    %c0_4 = arith.constant 0 : index
    %c0_5 = arith.constant 0 : index
    %5 = vector.load %arg4[%c0_4, %c0_5] : memref<32x32xf32, #tpu.memory_space<vmem>>, vector<32x32xf32>
    %cst = arith.constant dense<0.000000e+00> : vector<16x32xf32>
    %6 = tpu.matmul %4, %5, %cst {dimension_numbers = #tpu.dot_dimension_numbers<[1], [0], [0], [1], [0, 0, 1, 1], [], []>} : vector<16x32xf32>, vector<32x32xf32>, vector<16x32xf32> -> vector<16x32xf32>
    %7 = arith.addf %3, %6 : vector<16x32xf32>
    %c0_6 = arith.constant 0 : index
    %c0_7 = arith.constant 0 : index
    %8 = vector.load %arg6[%c0_6, %c0_7] : memref<16x32xf32, #tpu.memory_space<vmem>>, vector<16x32xf32>
    tpu.vector_store %arg6[%c0_6, %c0_7], %7 {strides = array<i32>} : memref<16x32xf32, #tpu.memory_space<vmem>>, vector<16x32xf32>,
    %c0_i32_8 = arith.constant 0 : i32
    %9 = arith.cmpi eq, %arg2, %c0_i32_8 : i32
    %10 = arith.extui %9 : i1 to i32
    %c0_i32_9 = arith.constant 0 : i32
    %11 = arith.cmpi ne, %10, %c0_i32_9 : i32
    scf.if %11 {
      %c0_10 = arith.constant 0 : index
      %c0_11 = arith.constant 0 : index
      %12 = vector.load %arg6[%c0_10, %c0_11] : memref<16x32xf32, #tpu.memory_space<vmem>>, vector<16x32xf32>
      %c0_12 = arith.constant 0 : index
      %c0_13 = arith.constant 0 : index
      %13 = vector.load %arg5[%c0_12, %c0_13] : memref<16x32xf32, #tpu.memory_space<vmem>>, vector<16x32xf32>
      tpu.vector_store %arg5[%c0_12, %c0_13], %12 {strides = array<i32>} : memref<16x32xf32, #tpu.memory_space<vmem>>, vector<16x32xf32>,
    } else {
    }
    return
  }
  func.func @transform_0(%arg0: i32, %arg1: i32, %arg2: i32) -> (i32, i32) {
    %c0_i32 = arith.constant 0 : i32
    return %arg0, %arg2 : i32, i32
  }
  func.func @transform_1(%arg0: i32, %arg1: i32, %arg2: i32) -> (i32, i32) {
    %c0_i32 = arith.constant 0 : i32
    return %arg2, %arg1 : i32, i32
  }
  func.func @transform_2(%arg0: i32, %arg1: i32, %arg2: i32) -> (i32, i32) {
    %c0_i32 = arith.constant 0 : i32
    return %arg0, %arg1 : i32, i32
  }
}

</mosaic_0001>

<llo_original>
// kernel: tpu_custom_call.1
$region0: #{tpu_custom_call.1}
  #allocation0 [shape = 'u32[]', space=smem, size = 0x4, offset = 0x4, fixed_abs, tag = 'smem constant byte address 0x4 - core index']
  #allocation1 [shape = 'u32[72,128]{1,0:T(1,128)}', space=vmem, size = 0x9000, scoped, tag = 'internal scratch']
  #allocation2 [shape = 'f32[16,32]{1,0:T(8,128)}', space=vmem, size = 0x2000, scoped, tag = 'scratch operand']
  %s0 = inlined_call_operand.hbm [shape: f32[16,32], index: 0, kind: input, shape index: {}]
  %s1 = inlined_call_operand.hbm [shape: f32[32,32], index: 1, kind: input, shape index: {}]
  %s2 = inlined_call_operand.hbm [shape: f32[16,32], index: 2, kind: output, shape index: {}]
  %s3 = sld [smem:[#allocation0]]
  $region34: #{tpu_custom_call.1} parent=0
    _
  %s5 = ssub.s32 1, %s3
  %s6 = scalar_select 0, %s5, %s3
  $region1: #{tpu_custom_call.1} parent=0
    #allocation3 [shape = 'u8[8192]{0}', space=vmem, size = 0x2000, scoped, tag = 'input window, operand 0, single buffered']
    #allocation4 [shape = 's32[1]{0}', space=sflag, size = 0x4, scoped, tag = 'scoped memory for tpu_custom_call.1']
    #allocation5 [shape = 's32[1]{0}', space=sflag, size = 0x4, scoped, tag = 'scoped memory for tpu_custom_call.1']
    #allocation6 [shape = 'u8[16384]{0}', space=vmem, size = 0x4000, scoped, tag = 'input window, operand 1, single buffered']
    #allocation7 [shape = 's32[1]{0}', space=sflag, size = 0x4, scoped, tag = 'scoped memory for tpu_custom_call.1']
    #allocation8 [shape = 'u8[8192]{0}', space=vmem, size = 0x2000, scoped, tag = 'output window, operand 0, single buffered']
    %7 = vsyncpa [#allocation4], 0
    %8 = vsyncpa [#allocation7], 0
    %9 = vsyncpa [#allocation5], 0
    // Predicated region
    $region2: #{tpu_custom_call.1} parent=1 // pred_check
      _
    $region3: #{tpu_custom_call.1} parent=1 // pred_check_branch
      %11 = sbr.rel (0) target = $region5
    $region4: #{tpu_custom_call.1} parent=1 // pred_region
      %13 = vsyncadd [#allocation4], 0
      %s14 = sshll.u32 %s0, 4
      %s15 = int_to_ptr.hbm [resolvable:$true] %s14
      %s16 = sshll.u32 [#allocation3], 4
      %s17 = int_to_ptr.vmem [resolvable:$true] %s16
      %22 = dma.hbm_to_vmem [thread:$0]  %s15, 256, %s17, [#allocation4], 128, 128, 8
    $region5: #{tpu_custom_call.1} parent=1 // pred_fallthru
      _
    // Predicated region
    $region6: #{tpu_custom_call.1} parent=1 // pred_check
      _
    $region7: #{tpu_custom_call.1} parent=1 // pred_check_branch
      %24 = sbr.rel (0) target = $region9
    $region8: #{tpu_custom_call.1} parent=1 // pred_region
      %26 = vsyncadd [#allocation7], 0
      %s27 = sshll.u32 %s1, 4
      %s28 = int_to_ptr.hbm [resolvable:$true] %s27
      %s29 = sshll.u32 [#allocation6], 4
      %s30 = int_to_ptr.vmem [resolvable:$true] %s29
      %35 = dma.hbm_to_vmem [thread:$0]  %s28, 512, %s30, [#allocation7], 128, 128, 8
    $region9: #{tpu_custom_call.1} parent=1 // pred_fallthru
      _
    // Predicated region
    $region10: #{tpu_custom_call.1} parent=1 // pred_check
      _
    $region11: #{tpu_custom_call.1} parent=1 // pred_check_branch
      %37 = sbr.rel (0) target = $region13
    $region12: #{tpu_custom_call.1} parent=1 // pred_region
      %39 = dma.done [#allocation4], 256
    $region13: #{tpu_custom_call.1} parent=1 // pred_fallthru
      _
    // Predicated region
    $region14: #{tpu_custom_call.1} parent=1 // pred_check
      _
    $region15: #{tpu_custom_call.1} parent=1 // pred_check_branch
      %41 = sbr.rel (0) target = $region17
    $region16: #{tpu_custom_call.1} parent=1 // pred_region
      %43 = dma.done [#allocation7], 512
    $region17: #{tpu_custom_call.1} parent=1 // pred_fallthru
      _
    %p44 = scmp.eq.s32.totalorder 0, 0
    // Predicated region
    $region18: #{tpu_custom_call.1} parent=1 // pred_check
      %p45 = pneg %p44
    $region19: #{tpu_custom_call.1} parent=1 // pred_check_branch
      %47 = sbr.rel (%p45) target = $region21
    $region20: #{tpu_custom_call.1} parent=1 // pred_region
      %vm48 = vcmask 261120
      %49 = vst.msk [vmem:[#allocation2] sm:$0xff] %vm48, 0.0
      %50 = vst.msk [vmem:[#allocation2 + $0x8] sm:$0xff] %vm48, 0.0
    $region21: #{tpu_custom_call.1} parent=1 // pred_fallthru
      _
    %v51 = vld [vmem:[#allocation2] sm:$0xff]
    %v52 = vld [vmem:[#allocation2 + $0x8] sm:$0xff]
    %v53 = vld [vmem:[#allocation3] sm:$0xff]
    %v54 = vld [vmem:[#allocation3 + $0x8] sm:$0xff]
    %v55 = vld [vmem:[#allocation6] sm:$0xff]
    %v56 = vld [vmem:[#allocation6 + $0x8] sm:$0xff]
    %v57 = vld [vmem:[#allocation6 + $0x10] sm:$0xff]
    %v58 = vld [vmem:[#allocation6 + $0x18] sm:$0xff]
    %vm59 = vcmask 261120
    %v61 = vsel %vm59, %v53, 0
    %v64 = vsel %vm59, %v54, 0
    %66 = vmatpush.msra.mxu0 0.0
    %67 = vmatpush.msra.mxu0 0.0
    %68 = vmatpush.msra.mxu0 0.0
    %69 = vmatpush.msra.mxu0 0.0
    %70 = vmatpush.msra.mxu0 0.0
    %71 = vmatpush.msra.mxu0 0.0
    %72 = vmatpush.msra.mxu0 0.0
    %73 = vmatpush.msra.mxu0 0.0
    %74 = vmatpush.msra.mxu0 0.0
    %75 = vmatpush.msra.mxu0 0.0
    %76 = vmatpush.msra.mxu0 0.0
    %77 = vmatpush.msra.mxu0 0.0
    %78 = vmatpush.msra.mxu0 %v58
    %79 = vmatpush.msra.mxu0 %v57
    %80 = vmatpush.msra.mxu0 %v56
    %81 = vmatpush.msra.mxu0 %v55
    %82 = vmatmul.f32.gmra.mxu0 %v61
    %v83 = vpop.f32.mrf.mxu0
    %v84 = vadd.f32 0.0, %v83
    %85 = vmatmul.f32.gmra.mxu0 %v64
    %v86 = vpop.f32.mrf.mxu0
    %v87 = vadd.f32 0.0, %v86
    %88 = vdwg.mxu0
    %v89 = vadd.f32 %v51, %v84
    %v90 = vadd.f32 %v52, %v87
    %91 = vst.msk [vmem:[#allocation2] sm:$0xff] %vm59, %v89
    %92 = vst.msk [vmem:[#allocation2 + $0x8] sm:$0xff] %vm59, %v90
    // Predicated region
    $region22: #{tpu_custom_call.1} parent=1 // pred_check
      %p93 = pneg %p44
    $region23: #{tpu_custom_call.1} parent=1 // pred_check_branch
      %95 = sbr.rel (%p93) target = $region25
    $region24: #{tpu_custom_call.1} parent=1 // pred_region
      %v96 = vld [vmem:[#allocation2] sm:$0xff]
      %v97 = vld [vmem:[#allocation2 + $0x8] sm:$0xff]
      %98 = vst.msk [vmem:[#allocation8] sm:$0xff] %vm59, %v96
      %99 = vst.msk [vmem:[#allocation8 + $0x8] sm:$0xff] %vm59, %v97
    $region25: #{tpu_custom_call.1} parent=1 // pred_fallthru
      _
    // Predicated region
    $region26: #{tpu_custom_call.1} parent=1 // pred_check
      _
    $region27: #{tpu_custom_call.1} parent=1 // pred_check_branch
      %101 = sbr.rel (0) target = $region29
    $region28: #{tpu_custom_call.1} parent=1 // pred_region
      %103 = vsyncadd [#allocation5], 0
      %s104 = sshll.u32 [#allocation8], 4
      %s105 = int_to_ptr.vmem [resolvable:$true] %s104
      %s106 = sshll.u32 %s2, 4
      %s107 = int_to_ptr.hbm [resolvable:$true] %s106
      %112 = dma.vmem_to_hbm [thread:$0]  %s105, 256, %s107, [#allocation5], 128, 128, 8
    $region29: #{tpu_custom_call.1} parent=1 // pred_fallthru
      _
    // Predicated region
    $region30: #{tpu_custom_call.1} parent=1 // pred_check
      _
    $region31: #{tpu_custom_call.1} parent=1 // pred_check_branch
      %114 = sbr.rel (0) target = $region33
    $region32: #{tpu_custom_call.1} parent=1 // pred_region
      %116 = dma.done [#allocation5], 256
    $region33: #{tpu_custom_call.1} parent=1 // pred_fallthru
      _
    %117 = vsyncpa [#allocation4], 1
    %118 = vsyncpa [#allocation7], 1
    %119 = vsyncpa [#allocation5], 1

</llo_original>
